<compile_context>
chip_gen: v6e
topology: v6e:2x2x1
jax: 0.10.0
libtpu: 0.0.40
codegen_flags: <defaults>
</compile_context>

<pallas_src>
import jax
import jax.numpy as jnp
from jax.experimental import pallas as pl
from jax.experimental.pallas import tpu as pltpu

INPUT_SIZE = 9
HIDDEN_SIZE = 64
OUTPUT_SIZE = 1

# Lane-width of one batch tile.  Multiple of 128; big enough that per-step DMA
# (~40 B/batch-element) amortizes the ~0.35 us grid-step overhead, small enough
# to keep double-buffered VMEM usage well under 2 MiB.
MAX_BATCH_TILE = 8192


def _mlp_kernel(xT_ref, w1_ref, b1_ref, w2_ref, b2_ref, o_ref):
    # xT_ref: (IN, Bt)     w1_ref: (HID, IN)     b1_ref: (HID, 1)
    # w2_ref: (OUT, HID)   b2_ref: (1,) in SMEM  o_ref:  (OUT, Bt)
    h = jnp.dot(w1_ref[...], xT_ref[...], preferred_element_type=jnp.float32)
    h = jnp.maximum(h + b1_ref[...], 0.0)                      # fc1 bias + ReLU (VPU)
    y = jnp.dot(w2_ref[...], h, preferred_element_type=jnp.float32)
    o_ref[...] = (y + b2_ref[0]).astype(o_ref.dtype)           # fc2 bias, lane-dense store


def feedforward_nn(x, w1, b1, w2, b2):
    """Forward pass of FeedforwardNN (fc1 -> ReLU -> fc2).

    Args:
      x:  (B, INPUT_SIZE) float32
      w1: (HIDDEN_SIZE, INPUT_SIZE)   -- PyTorch nn.Linear weight layout
      b1: (HIDDEN_SIZE,)
      w2: (OUTPUT_SIZE, HIDDEN_SIZE)
      b2: (OUTPUT_SIZE,)
    Returns:
      (B, OUTPUT_SIZE) float32
    """
    B = x.shape[0]

    # Flip batch into the lane dimension (single cheap XLA transpose; keeps the
    # in-kernel blocks sublane-compact so tiles can be large).
    xT = x.T                                   # (INPUT_SIZE, B)
    b1c = b1.reshape(HIDDEN_SIZE, 1)           # contiguous view, zero cost

    b_tile = B if B < MAX_BATCH_TILE else MAX_BATCH_TILE
    n_tiles = pl.cdiv(B, b_tile)

    cost = pl.CostEstimate(
        flops=2 * B * (INPUT_SIZE * HIDDEN_SIZE + HIDDEN_SIZE * OUTPUT_SIZE),
        transcendentals=0,
        bytes_accessed=4 * (B * (INPUT_SIZE + OUTPUT_SIZE)
                            + HIDDEN_SIZE * (INPUT_SIZE + OUTPUT_SIZE + 1)
                            + OUTPUT_SIZE),
    )

    out = pl.pallas_call(
        _mlp_kernel,
        out_shape=jax.ShapeDtypeStruct((OUTPUT_SIZE, B), jnp.float32),
        grid=(n_tiles,),
        in_specs=[
            pl.BlockSpec((INPUT_SIZE, b_tile), lambda i: (0, i)),        # xT tile
            pl.BlockSpec((HIDDEN_SIZE, INPUT_SIZE), lambda i: (0, 0)),   # w1 resident
            pl.BlockSpec((HIDDEN_SIZE, 1), lambda i: (0, 0)),            # b1 resident
            pl.BlockSpec((OUTPUT_SIZE, HIDDEN_SIZE), lambda i: (0, 0)),  # w2 resident
            pl.BlockSpec(memory_space=pltpu.MemorySpace.SMEM),           # b2 scalar
        ],
        out_specs=pl.BlockSpec((OUTPUT_SIZE, b_tile), lambda i: (0, i)),
        compiler_params=pltpu.CompilerParams(
            dimension_semantics=("parallel",)),   # v7x: shard batch tiles over both TCs
        cost_estimate=cost,
    )(xT, w1, b1c, w2, b2)

    # (OUT, B) -> (B, OUT); free relayout since OUTPUT_SIZE == 1.
    return out.T


def _reference(x, w1, b1, w2, b2):
    h = jnp.maximum(x @ w1.T + b1, 0.0)
    return h @ w2.T + b2


if __name__ == "__main__":
    key = jax.random.PRNGKey(0)
    kx, k1, k2, k3, k4 = jax.random.split(key, 5)

    # Deterministic parameter init (PyTorch-like uniform bounds, synthetic).
    bound1 = 1.0 / (INPUT_SIZE ** 0.5)
    bound2 = 1.0 / (HIDDEN_SIZE ** 0.5)
    w1 = jax.random.uniform(k1, (HIDDEN_SIZE, INPUT_SIZE), jnp.float32, -bound1, bound1)
    b1 = jax.random.uniform(k2, (HIDDEN_SIZE,), jnp.float32, -bound1, bound1)
    w2 = jax.random.uniform(k3, (OUTPUT_SIZE, HIDDEN_SIZE), jnp.float32, -bound2, bound2)
    b2 = jax.random.uniform(k4, (OUTPUT_SIZE,), jnp.float32, -bound2, bound2)

    fwd = jax.jit(feedforward_nn)

    # B=8: tiny single-block path; B=1000: single wide block (full-dim lane);
    # B=9001: multi-tile path with a partial, oddly-sized last tile.
    for B in (8, 1000, 9001):
        x = jax.random.normal(kx, (B, INPUT_SIZE), dtype=jnp.float32)
        out = jax.block_until_ready(fwd(x, w1, b1, w2, b2))
        ref = _reference(x, w1, b1, w2, b2)
        assert out.shape == (B, OUTPUT_SIZE), out.shape
        assert jnp.allclose(out, ref, atol=1e-5, rtol=1e-4), f"mismatch at B={B}"

    print("KERNEL_OK")
</pallas_src>

<mosaic_0001>
module attributes {stable_mosaic.version = 11 : i64} {
  func.func @_mlp_kernel(%arg0: i32, %arg1: memref<9x8xf32, #tpu.memory_space<vmem>>, %arg2: memref<64x9xf32, #tpu.memory_space<vmem>>, %arg3: memref<64x1xf32, #tpu.memory_space<vmem>>, %arg4: memref<1x64xf32, #tpu.memory_space<vmem>>, %arg5: memref<1xf32, #tpu.memory_space<smem>>, %arg6: memref<1x8xf32, #tpu.memory_space<vmem>>) attributes {dimension_semantics = [#tpu.dimension_semantics<parallel>], iteration_bounds = array<i64: 1>, scalar_prefetch = 0 : i64, scratch_operands = 0 : i64, tpu.core_type = #tpu.core_type<tc>, window_params = [{transform_indices = @transform_0, window_bounds = array<i64: 9, 8>}, {pipeline_mode = #tpu.pipeline_mode<synchronous>, transform_indices = @transform_1, window_bounds = array<i64: 64, 9>}, {pipeline_mode = #tpu.pipeline_mode<synchronous>, transform_indices = @transform_2, window_bounds = array<i64: 64, 1>}, {pipeline_mode = #tpu.pipeline_mode<synchronous>, transform_indices = @transform_3, window_bounds = array<i64: 1, 64>}, {transform_indices = @transform_4, window_bounds = array<i64: 1>}, {transform_indices = @transform_5, window_bounds = array<i64: 1, 8>}]} {
    %c0 = arith.constant 0 : index
    %c0_0 = arith.constant 0 : index
    %0 = vector.load %arg2[%c0, %c0_0] : memref<64x9xf32, #tpu.memory_space<vmem>>, vector<64x9xf32>
    %c0_1 = arith.constant 0 : index
    %c0_2 = arith.constant 0 : index
    %1 = vector.load %arg1[%c0_1, %c0_2] : memref<9x8xf32, #tpu.memory_space<vmem>>, vector<9x8xf32>
    %cst = arith.constant dense<0.000000e+00> : vector<64x8xf32>
    %2 = tpu.matmul %0, %1, %cst {dimension_numbers = #tpu.dot_dimension_numbers<[1], [0], [0], [1], [0, 0, 1, 1], [], []>} : vector<64x9xf32>, vector<9x8xf32>, vector<64x8xf32> -> vector<64x8xf32>
    %c0_3 = arith.constant 0 : index
    %c0_4 = arith.constant 0 : index
    %3 = vector.load %arg3[%c0_3, %c0_4] : memref<64x1xf32, #tpu.memory_space<vmem>>, vector<64x1xf32>
    %4 = vector.broadcast %3 : vector<64x1xf32> to vector<64x8xf32>
    %5 = arith.addf %2, %4 : vector<64x8xf32>
    %cst_5 = arith.constant 0.000000e+00 : f32
    %6 = vector.broadcast %cst_5 : f32 to vector<64x8xf32>
    %7 = arith.maximumf %5, %6 : vector<64x8xf32>
    %c0_6 = arith.constant 0 : index
    %c0_7 = arith.constant 0 : index
    %8 = vector.load %arg4[%c0_6, %c0_7] : memref<1x64xf32, #tpu.memory_space<vmem>>, vector<1x64xf32>
    %cst_8 = arith.constant dense<0.000000e+00> : vector<1x8xf32>
    %9 = tpu.matmul %8, %7, %cst_8 {dimension_numbers = #tpu.dot_dimension_numbers<[1], [0], [0], [1], [0, 0, 1, 1], [], []>} : vector<1x64xf32>, vector<64x8xf32>, vector<1x8xf32> -> vector<1x8xf32>
    %c0_9 = arith.constant 0 : index
    %10 = memref.load %arg5[%c0_9] : memref<1xf32, #tpu.memory_space<smem>>
    %11 = vector.broadcast %10 : f32 to vector<1x8xf32>
    %12 = arith.addf %9, %11 : vector<1x8xf32>
    %c0_10 = arith.constant 0 : index
    %c0_11 = arith.constant 0 : index
    %13 = vector.load %arg6[%c0_10, %c0_11] : memref<1x8xf32, #tpu.memory_space<vmem>>, vector<1x8xf32>
    tpu.vector_store %arg6[%c0_10, %c0_11], %12 {strides = array<i32>} : memref<1x8xf32, #tpu.memory_space<vmem>>, vector<1x8xf32>,
    return
  }
  func.func @transform_0(%arg0: i32) -> (i32, i32) {
    %c0_i32 = arith.constant 0 : i32
    %c0_i32_0 = arith.constant 0 : i32
    return %c0_i32, %arg0 : i32, i32
  }
  func.func @transform_1(%arg0: i32) -> (i32, i32) {
    %c0_i32 = arith.constant 0 : i32
    %c0_i32_0 = arith.constant 0 : i32
    %c0_i32_1 = arith.constant 0 : i32
    return %c0_i32, %c0_i32_0 : i32, i32
  }
  func.func @transform_2(%arg0: i32) -> (i32, i32) {
    %c0_i32 = arith.constant 0 : i32
    %c0_i32_0 = arith.constant 0 : i32
    %c0_i32_1 = arith.constant 0 : i32
    return %c0_i32, %c0_i32_0 : i32, i32
  }
  func.func @transform_3(%arg0: i32) -> (i32, i32) {
    %c0_i32 = arith.constant 0 : i32
    %c0_i32_0 = arith.constant 0 : i32
    %c0_i32_1 = arith.constant 0 : i32
    return %c0_i32, %c0_i32_0 : i32, i32
  }
  func.func @transform_4(%arg0: i32) -> i32 {
    %c0_i32 = arith.constant 0 : i32
    %c0_i32_0 = arith.constant 0 : i32
    return %c0_i32 : i32
  }
  func.func @transform_5(%arg0: i32) -> (i32, i32) {
    %c0_i32 = arith.constant 0 : i32
    %c0_i32_0 = arith.constant 0 : i32
    return %c0_i32, %arg0 : i32, i32
  }
}

</mosaic_0001>

<llo_original>
// kernel: feedforward_nn.1
$region0: #{feedforward_nn.1}
  #allocation0 [shape = 'u32[]', space=smem, size = 0x4, offset = 0x4, fixed_abs, tag = 'smem constant byte address 0x4 - core index']
  #allocation1 [shape = 'u32[144,128]{1,0:T(1,128)}', space=vmem, size = 0x12000, scoped, tag = 'internal scratch']
  #allocation2 [shape = 'f32[1]{0:T(128)S(6)}', space=smem, size = 0x200, scoped, tag = 'scoped memory for feedforward_nn.1']
  %s0 = inlined_call_operand.vmem [shape: f32[9,8], index: 0, kind: input, shape index: {}]
  %s1 = inlined_call_operand.vmem [shape: f32[64,9], index: 1, kind: input, shape index: {}]
  %s2 = inlined_call_operand.vmem [shape: f32[64,1], index: 2, kind: input, shape index: {}]
  %s3 = inlined_call_operand.vmem [shape: f32[1,64], index: 3, kind: input, shape index: {}]
  %s4 = inlined_call_operand.<no memory space> [shape: f32[1], index: 4, kind: input, shape index: {}]
  %s5 = inlined_call_operand.hbm [shape: f32[1,8], index: 5, kind: output, shape index: {}]
  %s6 = sld [smem:[#allocation0]]
  $region30: #{feedforward_nn.1} parent=0
    _
  %s8 = ssub.s32 1, %s6
  %s9 = scalar_select 0, %s8, %s6
  %10 = sst [smem:[#allocation2]] %s4
  $region1: #{feedforward_nn.1} parent=0
    #allocation3 [shape = 'u8[512]{0}', space=vmem, size = 0x400, scoped, tag = 'output window, operand 0, single buffered']
    #allocation4 [shape = 's32[1]{0}', space=sflag, size = 0x4, scoped, tag = 'scoped memory for feedforward_nn.1']
    %11 = vsyncpa [#allocation4], 0
    // Predicated region
    $region2: #{feedforward_nn.1} parent=1 // pred_check
      _
    $region3: #{feedforward_nn.1} parent=1 // pred_check_branch
      %13 = sbr.rel (0) target = $region5
    $region4: #{feedforward_nn.1} parent=1 // pred_region
      _
    $region5: #{feedforward_nn.1} parent=1 // pred_fallthru
      _
    // Predicated region
    $region6: #{feedforward_nn.1} parent=1 // pred_check
      _
    $region7: #{feedforward_nn.1} parent=1 // pred_check_branch
      %15 = sbr.rel (0) target = $region9
    $region8: #{feedforward_nn.1} parent=1 // pred_region
      _
    $region9: #{feedforward_nn.1} parent=1 // pred_fallthru
      _
    // Predicated region
    $region10: #{feedforward_nn.1} parent=1 // pred_check
      _
    $region11: #{feedforward_nn.1} parent=1 // pred_check_branch
      %17 = sbr.rel (0) target = $region13
    $region12: #{feedforward_nn.1} parent=1 // pred_region
      _
    $region13: #{feedforward_nn.1} parent=1 // pred_fallthru
      _
    // Predicated region
    $region14: #{feedforward_nn.1} parent=1 // pred_check
      _
    $region15: #{feedforward_nn.1} parent=1 // pred_check_branch
      %19 = sbr.rel (0) target = $region17
    $region16: #{feedforward_nn.1} parent=1 // pred_region
      _
    $region17: #{feedforward_nn.1} parent=1 // pred_fallthru
      _
    // Predicated region
    $region18: #{feedforward_nn.1} parent=1 // pred_check
      _
    $region19: #{feedforward_nn.1} parent=1 // pred_check_branch
      %21 = sbr.rel (0) target = $region21
    $region20: #{feedforward_nn.1} parent=1 // pred_region
      _
    $region21: #{feedforward_nn.1} parent=1 // pred_fallthru
      _
    %v22 = vld [vmem:[%s1] sm:$0xff]
    %v23 = vld [vmem:[%s1 + $0x8] sm:$0xff]
    %v24 = vld [vmem:[%s1 + $0x10] sm:$0xff]
    %v25 = vld [vmem:[%s1 + $0x18] sm:$0xff]
    %v26 = vld [vmem:[%s1 + $0x20] sm:$0xff]
    %v27 = vld [vmem:[%s1 + $0x28] sm:$0xff]
    %v28 = vld [vmem:[%s1 + $0x30] sm:$0xff]
    %v29 = vld [vmem:[%s1 + $0x38] sm:$0xff]
    %v30 = vld [vmem:[%s0] sm:$0xff]
    %v31 = vld [vmem:[%s0 + $0x8] sm:$0x1]
    %v32 = vld [vmem:[%s2] sm:$0xff]
    %v33 = vld [vmem:[%s2 + $0x8] sm:$0xff]
    %v34 = vld [vmem:[%s2 + $0x10] sm:$0xff]
    %v35 = vld [vmem:[%s2 + $0x18] sm:$0xff]
    %v36 = vld [vmem:[%s2 + $0x20] sm:$0xff]
    %v37 = vld [vmem:[%s2 + $0x28] sm:$0xff]
    %v38 = vld [vmem:[%s2 + $0x30] sm:$0xff]
    %v39 = vld [vmem:[%s2 + $0x38] sm:$0xff]
    %41 = vset.pattern.permute.xlu0 0
    %42 = vperm.xlu0 %41, %v32
    %v43 = vpop.permute.xlu0 %42
    %46 = vset.pattern.permute.xlu0 0
    %47 = vperm.xlu0 %46, %v33
    %v48 = vpop.permute.xlu0 %47
    %51 = vset.pattern.permute.xlu0 0
    %52 = vperm.xlu0 %51, %v34
    %v53 = vpop.permute.xlu0 %52
    %56 = vset.pattern.permute.xlu0 0
    %57 = vperm.xlu0 %56, %v35
    %v58 = vpop.permute.xlu0 %57
    %61 = vset.pattern.permute.xlu0 0
    %62 = vperm.xlu0 %61, %v36
    %v63 = vpop.permute.xlu0 %62
    %66 = vset.pattern.permute.xlu0 0
    %67 = vperm.xlu0 %66, %v37
    %v68 = vpop.permute.xlu0 %67
    %71 = vset.pattern.permute.xlu0 0
    %72 = vperm.xlu0 %71, %v38
    %v73 = vpop.permute.xlu0 %72
    %76 = vset.pattern.permute.xlu0 0
    %77 = vperm.xlu0 %76, %v39
    %v78 = vpop.permute.xlu0 %77
    %vm80 = vcmask 72704
    %v82 = vsel %vm80, %v22, 0
    %v85 = vsel %vm80, %v23, 0
    %v88 = vsel %vm80, %v24, 0
    %v91 = vsel %vm80, %v25, 0
    %v94 = vsel %vm80, %v26, 0
    %v97 = vsel %vm80, %v27, 0
    %v100 = vsel %vm80, %v28, 0
    %v103 = vsel %vm80, %v29, 0
    %vm105 = vcmask 1040384
    %v107 = vsel %vm105, %v31, 0
    %109 = vmatprep.subr.mxu0 0.0
    %110 = vmatpush1.msra.mxu0 0.0
    %111 = vmatprep.subr.mxu0 0.0
    %112 = vmatpush1.msra.mxu0 0.0
    %113 = vmatprep.subr.mxu0 0.0
    %114 = vmatpush1.msra.mxu0 0.0
    %115 = vmatprep.subr.mxu0 0.0
    %116 = vmatpush1.msra.mxu0 0.0
    %117 = vmatprep.subr.mxu0 0.0
    %118 = vmatpush1.msra.mxu0 0.0
    %119 = vmatprep.subr.mxu0 0.0
    %120 = vmatpush1.msra.mxu0 0.0
    %121 = vmatprep.subr.mxu0 0.0
    %122 = vmatpush1.msra.mxu0 0.0
    %123 = vmatprep.subr.mxu0 0.0
    %124 = vmatpush1.msra.mxu0 0.0
    %125 = vmatprep.subr.mxu0 0.0
    %126 = vmatpush1.msra.mxu0 0.0
    %127 = vmatprep.subr.mxu0 0.0
    %128 = vmatpush1.msra.mxu0 0.0
    %129 = vmatprep.subr.mxu0 0.0
    %130 = vmatpush1.msra.mxu0 0.0
    %131 = vmatprep.subr.mxu0 0.0
    %132 = vmatpush1.msra.mxu0 0.0
    %133 = vmatprep.subr.mxu0 0.0
    %134 = vmatpush1.msra.mxu0 0.0
    %135 = vmatprep.subr.mxu0 0.0
    %136 = vmatpush1.msra.mxu0 0.0
    %137 = vmatprep.subr.mxu0 0.0
    %138 = vmatpush1.msra.mxu0 %v107
    %139 = vmatprep.subr.mxu0 0.0
    %140 = vmatpush1.msra.mxu0 %v30
    %141 = vmatprep.subr.mxu0 0.0
    %142 = vmatpush2.msra.mxu0 0.0
    %143 = vmatprep.subr.mxu0 0.0
    %144 = vmatpush2.msra.mxu0 0.0
    %145 = vmatprep.subr.mxu0 0.0
    %146 = vmatpush2.msra.mxu0 0.0
    %147 = vmatprep.subr.mxu0 0.0
    %148 = vmatpush2.msra.mxu0 0.0
    %149 = vmatprep.subr.mxu0 0.0
    %150 = vmatpush2.msra.mxu0 0.0
    %151 = vmatprep.subr.mxu0 0.0
    %152 = vmatpush2.msra.mxu0 0.0
    %153 = vmatprep.subr.mxu0 0.0
    %154 = vmatpush2.msra.mxu0 0.0
    %155 = vmatprep.subr.mxu0 0.0
    %156 = vmatpush2.msra.mxu0 0.0
    %157 = vmatprep.subr.mxu0 0.0
    %158 = vmatpush2.msra.mxu0 0.0
    %159 = vmatprep.subr.mxu0 0.0
    %160 = vmatpush2.msra.mxu0 0.0
    %161 = vmatprep.subr.mxu0 0.0
    %162 = vmatpush2.msra.mxu0 0.0
    %163 = vmatprep.subr.mxu0 0.0
    %164 = vmatpush2.msra.mxu0 0.0
    %165 = vmatprep.subr.mxu0 0.0
    %166 = vmatpush2.msra.mxu0 0.0
    %167 = vmatprep.subr.mxu0 0.0
    %168 = vmatpush2.msra.mxu0 0.0
    %169 = vmatprep.subr.mxu0 0.0
    %170 = vmatpush2.msra.mxu0 0.0
    %171 = vmatprep.subr.mxu0 0.0
    %172 = vmatpush2.msra.mxu0 0.0
    %173 = vmatprep.mubr.f32.mxu0 0.0
    %174 = vmatmul.mubr.f32.gmra.mxu0 %v82
    %v175 = vpop.f32.mrf.mxu0
    %v176 = vadd.f32 %v43, %v175
    %v177 = vpop.f32.mrf.mxu0
    %178 = vmatprep.mubr.f32.mxu0 0.0
    %179 = vmatmul.mubr.f32.gmra.mxu0 %v85
    %v180 = vpop.f32.mrf.mxu0
    %v181 = vadd.f32 %v48, %v180
    %v182 = vpop.f32.mrf.mxu0
    %183 = vmatprep.mubr.f32.mxu0 0.0
    %184 = vmatmul.mubr.f32.gmra.mxu0 %v88
    %v185 = vpop.f32.mrf.mxu0
    %v186 = vadd.f32 %v53, %v185
    %v187 = vpop.f32.mrf.mxu0
    %188 = vmatprep.mubr.f32.mxu0 0.0
    %189 = vmatmul.mubr.f32.gmra.mxu0 %v91
    %v190 = vpop.f32.mrf.mxu0
    %v191 = vadd.f32 %v58, %v190
    %v192 = vpop.f32.mrf.mxu0
    %193 = vmatprep.mubr.f32.mxu0 0.0
    %194 = vmatmul.mubr.f32.gmra.mxu0 %v94
    %v195 = vpop.f32.mrf.mxu0
    %v196 = vadd.f32 %v63, %v195
    %v197 = vpop.f32.mrf.mxu0
    %198 = vmatprep.mubr.f32.mxu0 0.0
    %199 = vmatmul.mubr.f32.gmra.mxu0 %v97
    %v200 = vpop.f32.mrf.mxu0
    %v201 = vadd.f32 %v68, %v200
    %v202 = vpop.f32.mrf.mxu0
    %203 = vmatprep.mubr.f32.mxu0 0.0
    %204 = vmatmul.mubr.f32.gmra.mxu0 %v100
    %v205 = vpop.f32.mrf.mxu0
    %v206 = vadd.f32 %v73, %v205
    %v207 = vpop.f32.mrf.mxu0
    %208 = vmatprep.mubr.f32.mxu0 0.0
    %209 = vmatmul.mubr.f32.gmra.mxu0 %v103
    %v210 = vpop.f32.mrf.mxu0
    %v211 = vadd.f32 %v78, %v210
    %v212 = vpop.f32.mrf.mxu0
    %213 = vdwg.mxu0
    %v214 = vmax.f32 %v176, 0.0
    %v215 = vmax.f32 %v181, 0.0
    %v216 = vmax.f32 %v186, 0.0
    %v217 = vmax.f32 %v191, 0.0
    %v218 = vmax.f32 %v196, 0.0
    %v219 = vmax.f32 %v201, 0.0
    %v220 = vmax.f32 %v206, 0.0
    %v221 = vmax.f32 %v211, 0.0
    %v222 = vld [vmem:[%s3] sm:$0x1]
    %s223 = sld [smem:[#allocation2]]
    %v224 = vstv %s223
    %vm225 = vcmask 523264
    %v227 = vsel %vm225, %v222, 0
    %229 = vmatprep.subr.mxu0 0.0
    %230 = vmatpush1.msra.mxu0 0.0
    %231 = vmatprep.subr.mxu0 0.0
    %232 = vmatpush1.msra.mxu0 0.0
    %233 = vmatprep.subr.mxu0 0.0
    %234 = vmatpush1.msra.mxu0 0.0
    %235 = vmatprep.subr.mxu0 0.0
    %236 = vmatpush1.msra.mxu0 0.0
    %237 = vmatprep.subr.mxu0 0.0
    %238 = vmatpush1.msra.mxu0 0.0
    %239 = vmatprep.subr.mxu0 0.0
    %240 = vmatpush1.msra.mxu0 0.0
    %241 = vmatprep.subr.mxu0 0.0
    %242 = vmatpush1.msra.mxu0 0.0
    %243 = vmatprep.subr.mxu0 0.0
    %244 = vmatpush1.msra.mxu0 0.0
    %245 = vmatprep.subr.mxu0 0.0
    %246 = vmatpush1.msra.mxu0 %v221
    %247 = vmatprep.subr.mxu0 0.0
    %248 = vmatpush1.msra.mxu0 %v220
    %249 = vmatprep.subr.mxu0 0.0
    %250 = vmatpush1.msra.mxu0 %v219
    %251 = vmatprep.subr.mxu0 0.0
    %252 = vmatpush1.msra.mxu0 %v218
    %253 = vmatprep.subr.mxu0 0.0
    %254 = vmatpush1.msra.mxu0 %v217
    %255 = vmatprep.subr.mxu0 0.0
    %256 = vmatpush1.msra.mxu0 %v216
    %257 = vmatprep.subr.mxu0 0.0
    %258 = vmatpush1.msra.mxu0 %v215
    %259 = vmatprep.subr.mxu0 0.0
    %260 = vmatpush1.msra.mxu0 %v214
    %261 = vmatprep.subr.mxu0 0.0
    %262 = vmatpush2.msra.mxu0 0.0
    %263 = vmatprep.subr.mxu0 0.0
    %264 = vmatpush2.msra.mxu0 0.0
    %265 = vmatprep.subr.mxu0 0.0
    %266 = vmatpush2.msra.mxu0 0.0
    %267 = vmatprep.subr.mxu0 0.0
    %268 = vmatpush2.msra.mxu0 0.0
    %269 = vmatprep.subr.mxu0 0.0
    %270 = vmatpush2.msra.mxu0 0.0
    %271 = vmatprep.subr.mxu0 0.0
    %272 = vmatpush2.msra.mxu0 0.0
    %273 = vmatprep.subr.mxu0 0.0
    %274 = vmatpush2.msra.mxu0 0.0
    %275 = vmatprep.subr.mxu0 0.0
    %276 = vmatpush2.msra.mxu0 0.0
    %277 = vmatprep.subr.mxu0 0.0
    %278 = vmatpush2.msra.mxu0 0.0
    %279 = vmatprep.subr.mxu0 0.0
    %280 = vmatpush2.msra.mxu0 0.0
    %281 = vmatprep.subr.mxu0 0.0
    %282 = vmatpush2.msra.mxu0 0.0
    %283 = vmatprep.subr.mxu0 0.0
    %284 = vmatpush2.msra.mxu0 0.0
    %285 = vmatprep.subr.mxu0 0.0
    %286 = vmatpush2.msra.mxu0 0.0
    %287 = vmatprep.subr.mxu0 0.0
    %288 = vmatpush2.msra.mxu0 0.0
    %289 = vmatprep.subr.mxu0 0.0
    %290 = vmatpush2.msra.mxu0 0.0
    %291 = vmatprep.subr.mxu0 0.0
    %292 = vmatpush2.msra.mxu0 0.0
    %293 = vmatprep.mubr.f32.mxu0 0.0
    %294 = vmatmul.mubr.f32.gmra.mxu0 %v227
    %v295 = vpop.f32.mrf.mxu0
    %v296 = vadd.f32 %v224, %v295
    %v297 = vpop.f32.mrf.mxu0
    %298 = vdwg.mxu0
    %vm299 = vcmask 57344
    %300 = vst.msk [vmem:[#allocation3] sm:$0x1] %vm299, %v296
    // Predicated region
    $region22: #{feedforward_nn.1} parent=1 // pred_check
      _
    $region23: #{feedforward_nn.1} parent=1 // pred_check_branch
      %302 = sbr.rel (0) target = $region25
    $region24: #{feedforward_nn.1} parent=1 // pred_region
      %s304 = ssub.s32 16, 16
      %305 = vsyncadd [#allocation4], %s304
      %s307 = sshll.u32 [#allocation3], 4
      %s308 = int_to_ptr.vmem [resolvable:$true] %s307
      %310 = dma.vmem_to_hbm [thread:$0]  %s308, 16, %s5, [#allocation4]
    $region25: #{feedforward_nn.1} parent=1 // pred_fallthru
      _
    // Predicated region
    $region26: #{feedforward_nn.1} parent=1 // pred_check
      _
    $region27: #{feedforward_nn.1} parent=1 // pred_check_branch
      %312 = sbr.rel (0) target = $region29
    $region28: #{feedforward_nn.1} parent=1 // pred_region
      %313 = dma.done [#allocation4], 16
    $region29: #{feedforward_nn.1} parent=1 // pred_fallthru
      _
    %314 = vsyncpa [#allocation4], 1

</llo_original>
